<compile_context>
chip_gen: v5e
topology: v5e:2x2
jax: 0.10.0
libtpu: 0.0.40
codegen_flags: <defaults>
</compile_context>

<pallas_src>
import functools

import jax
import jax.numpy as jnp
from jax.experimental import pallas as pl
from jax.experimental.pallas import tpu as pltpu


def _attn_kernel(dec_bias_ref, enc_ref, we_ref, v_ref, out_ref, *, s_valid):
    # dec_bias_ref : [Bb, A]           precomputed  dec_last @ Wd.T + b   (f32)
    # enc_ref      : [Bb*S_pad, Denc]  encoder rows for this batch block (flat)
    # we_ref       : [Denc, A]         encoder half of W, pre-transposed
    # v_ref        : [1, A]            v_a weight (row vector, f32)
    # out_ref      : [Bb, S_pad]       attention weights (lane-dense)
    Bb, S_pad = out_ref.shape
    A = we_ref.shape[1]

    # One big MXU matmul: (Bb*S_pad, Denc) @ (Denc, A) -> f32 accumulate.
    enc_proj = jnp.dot(enc_ref[...], we_ref[...],
                       preferred_element_type=jnp.float32)

    # Free-view reshape (S_pad % 8 == 0), row-broadcast decoder bias, tanh (EUP).
    h = jnp.tanh(enc_proj.reshape(Bb, S_pad, A) + dec_bias_ref[...][:, None, :])

    # v_a projection as VPU multiply + lane reduce -> lane-dense [Bb, S_pad].
    scores = jnp.sum(h * v_ref[...], axis=-1)

    # Mask sequence padding (static check; no-op when S was already aligned).
    if s_valid != S_pad:
        lane = jax.lax.broadcasted_iota(jnp.int32, (Bb, S_pad), 1)
        scores = jnp.where(lane < s_valid, scores, -jnp.inf)

    # Max-subtracted softmax over the sequence (lane) axis, f32.
    m = jnp.max(scores, axis=-1, keepdims=True)
    e = jnp.exp(scores - m)
    denom = jnp.sum(e, axis=-1, keepdims=True)
    probs = e * pl.reciprocal(denom, approx=True)

    out_ref[...] = probs.astype(out_ref.dtype)


def _vmem_caps():
    """Generation-aware (physical VMEM derived) budget for tile selection and
    the scoped vmem limit handed to the compiler."""
    try:
        phys = int(pltpu.get_tpu_info().vmem_capacity_bytes)
    except Exception:
        phys = 64 * 1024 * 1024          # conservative (v7x per-TC) fallback
    budget = int(phys * 0.45)            # tiles + in-kernel intermediates
    limit = int(phys * 0.75)             # scoped VMEM limit request
    return budget, limit


def _choose_block_b(B, S_pad, Denc, A, enc_itemsize, w_itemsize, budget_bytes):
    """Largest batch block Bb dividing B that (a) is sublane-legal
    (Bb % 8 == 0 or Bb == B), (b) fits the VMEM budget INCLUDING the f32
    (Bb*S_pad, A) intermediates, and (c) preferentially leaves >= 4 grid steps
    (then >= 2) so DMA pipelining / megacore sharding have work to overlap."""
    def tile_bytes(bb):
        rows = bb * S_pad
        enc = rows * Denc * enc_itemsize * 2        # double-buffered input
        dec = bb * A * 4 * 2                        # double-buffered bias
        out = rows * 4 * 2                          # double-buffered output
        consts = Denc * A * w_itemsize + A * 4      # single-buffered constants
        inter = rows * A * 4 * 3 + rows * 4 * 4     # enc_proj + tanh/score temps
        return enc + dec + out + consts + inter

    divisors = [bb for bb in range(1, B + 1) if B % bb == 0]
    aligned = [bb for bb in divisors if (bb % 8 == 0 or bb == B)]
    fitting = [bb for bb in aligned if tile_bytes(bb) <= budget_bytes]
    if not fitting:
        fitting = [min(aligned)] if aligned else [B]

    for min_steps in (4, 2, 1):
        cands = [bb for bb in fitting if B // bb >= min_steps]
        if cands:
            return max(cands)
    return max(fitting)


def _const_spec(shape):
    """Constant-index block (index_map always (0,0)): single-buffer if the
    pipeline_mode / Buffered API is available, otherwise default buffering."""
    try:
        return pl.BlockSpec(shape, lambda bi: (0, 0),
                            pipeline_mode=pl.Buffered(1))
    except (TypeError, AttributeError):
        return pl.BlockSpec(shape, lambda bi: (0, 0))


def seq2seq_attention_pallas(decoder_hidden, encoder_outputs, W, b, v_a,
                             block_b=None, use_bf16=True,
                             vmem_budget_bytes=None):
    """decoder_hidden: [L, B, Ddec], encoder_outputs: [B, S, Denc]
    W: [A, Ddec+Denc] (torch Linear weight for cat([dec, enc])), b: [A],
    v_a: [1, A] (no bias).  Returns attention weights [B, S]."""
    B, S, Denc = encoder_outputs.shape
    Ddec = decoder_hidden.shape[-1]
    A = W.shape[0]

    # ---- wrapper-side glue (cheap XLA ops, done once) ----
    # Pad the sequence axis to a sublane multiple: keeps every BlockSpec
    # (8,128)-legal and makes the in-kernel reshape a free view.
    S_pad = max(8, ((S + 7) // 8) * 8)
    enc = encoder_outputs
    if S_pad != S:
        enc = jnp.pad(enc, ((0, 0), (0, S_pad - S), (0, 0)))

    dec_last = decoder_hidden[-1]                       # [B, Ddec]
    w_dec = W[:, :Ddec].T                               # [Ddec, A]
    w_enc = W[:, Ddec:].T                               # [Denc, A]
    # Hoisted degenerate matmul: one [B,Ddec]@[Ddec,A] + bias for all batches.
    dec_bias = (dec_last @ w_dec + b[None, :]).astype(jnp.float32)   # [B, A]
    enc2d = enc.reshape(B * S_pad, Denc)                # lane-dense row slab
    v = v_a.astype(jnp.float32)                         # [1, A]

    if use_bf16:
        # bf16 MXU fast path; f32 accumulation stays inside the kernel.
        enc2d = enc2d.astype(jnp.bfloat16)
        w_enc = w_enc.astype(jnp.bfloat16)
    else:
        w_enc = w_enc.astype(jnp.float32)
    # TODO(synk): optional int8 (v6e) / fp8 (v7x) encoder-slab quantization path.

    budget, vmem_limit = _vmem_caps()
    if vmem_budget_bytes is not None:
        budget = vmem_budget_bytes

    if block_b is None:
        block_b = _choose_block_b(B, S_pad, Denc, A,
                                  jnp.dtype(enc2d.dtype).itemsize,
                                  jnp.dtype(w_enc.dtype).itemsize,
                                  budget)
    Bb = block_b
    grid = (B // Bb,)

    kernel = functools.partial(_attn_kernel, s_valid=S)

    out = pl.pallas_call(
        kernel,
        out_shape=jax.ShapeDtypeStruct((B, S_pad), jnp.float32),
        grid_spec=pltpu.PrefetchScalarGridSpec(
            num_scalar_prefetch=0,
            grid=grid,
            in_specs=[
                pl.BlockSpec((Bb, A), lambda bi: (bi, 0)),          # dec_bias
                pl.BlockSpec((Bb * S_pad, Denc), lambda bi: (bi, 0)),  # enc rows
                _const_spec((Denc, A)),                             # W_enc
                _const_spec((1, A)),                                # v_a
            ],
            out_specs=pl.BlockSpec((Bb, S_pad), lambda bi: (bi, 0)),
        ),
        compiler_params=pltpu.CompilerParams(
            dimension_semantics=("parallel",),
            vmem_limit_bytes=vmem_limit),
    )(dec_bias, enc2d, w_enc, v)

    if S_pad != S:
        out = out[:, :S]
    return out                                           # [B, S]


def _reference(decoder_hidden, encoder_outputs, W, b, v_a):
    S = encoder_outputs.shape[1]
    dec = jnp.repeat(decoder_hidden[-1][:, None, :], S, axis=1)     # [B, S, Ddec]
    x = jnp.concatenate([dec, encoder_outputs], axis=-1)            # [B, S, Ddec+Denc]
    h = jnp.tanh(jnp.einsum("bsd,ad->bsa", x, W) + b)
    scores = jnp.einsum("bsa,oa->bso", h, v_a)[..., 0]              # [B, S]
    return jax.nn.softmax(scores, axis=-1)


if __name__ == "__main__":
    # small shapes consistent with the module
    num_layers, B, S = 2, 2, 8
    enc_dim, dec_dim, attn_dim = 32, 32, 32

    key = jax.random.PRNGKey(0)
    k1, k2, k3, k4, k5 = jax.random.split(key, 5)

    decoder_hidden = jax.random.normal(k1, (num_layers, B, dec_dim), jnp.float32)
    encoder_outputs = jax.random.normal(k2, (B, S, enc_dim), jnp.float32)

    # deterministic "Linear" parameter init (shapes per nn.Linear in __init__)
    fan_in = enc_dim + dec_dim
    bound = 1.0 / jnp.sqrt(fan_in)
    W = jax.random.uniform(k3, (attn_dim, fan_in), jnp.float32, -bound, bound)
    b = jax.random.uniform(k4, (attn_dim,), jnp.float32, -bound, bound)
    bound_v = 1.0 / jnp.sqrt(attn_dim)
    v_a = jax.random.uniform(k5, (1, attn_dim), jnp.float32, -bound_v, bound_v)

    attn = seq2seq_attention_pallas(decoder_hidden, encoder_outputs, W, b, v_a)
    attn = jax.block_until_ready(attn)

    ref = _reference(decoder_hidden, encoder_outputs, W, b, v_a)
    assert attn.shape == (B, S)
    # bf16 MXU path + approx reciprocal -> relaxed tolerance per perf review.
    assert jnp.allclose(attn, ref, atol=1e-2, rtol=1e-2)
    assert jnp.allclose(jnp.sum(attn, axis=-1), 1.0, atol=1e-2)

    # Also sanity-check the exact-precision path against the 1e-5 reference.
    attn_f32 = seq2seq_attention_pallas(decoder_hidden, encoder_outputs,
                                        W, b, v_a, use_bf16=False)
    attn_f32 = jax.block_until_ready(attn_f32)
    assert jnp.allclose(attn_f32, ref, atol=1e-3, rtol=1e-3)

    print("KERNEL_OK")
</pallas_src>

<mosaic_0001>
module attributes {stable_mosaic.version = 11 : i64} {
  func.func @_attn_kernel(%arg0: i32, %arg1: memref<2x32xf32, #tpu.memory_space<vmem>>, %arg2: memref<16x32xbf16, #tpu.memory_space<vmem>>, %arg3: memref<32x32xbf16, #tpu.memory_space<vmem>>, %arg4: memref<1x32xf32, #tpu.memory_space<vmem>>, %arg5: memref<2x8xf32, #tpu.memory_space<vmem>>) attributes {dimension_semantics = [#tpu.dimension_semantics<parallel>], iteration_bounds = array<i64: 1>, scalar_prefetch = 0 : i64, scratch_operands = 0 : i64, tpu.core_type = #tpu.core_type<tc>, window_params = [{transform_indices = @transform_0, window_bounds = array<i64: 2, 32>}, {transform_indices = @transform_1, window_bounds = array<i64: 16, 32>}, {pipeline_mode = #tpu.pipeline_mode<synchronous>, transform_indices = @transform_2, window_bounds = array<i64: 32, 32>}, {pipeline_mode = #tpu.pipeline_mode<synchronous>, transform_indices = @transform_3, window_bounds = array<i64: 1, 32>}, {transform_indices = @transform_4, window_bounds = array<i64: 2, 8>}]} {
    %c0 = arith.constant 0 : index
    %c0_0 = arith.constant 0 : index
    %0 = vector.load %arg2[%c0, %c0_0] : memref<16x32xbf16, #tpu.memory_space<vmem>>, vector<16x32xbf16>
    %c0_1 = arith.constant 0 : index
    %c0_2 = arith.constant 0 : index
    %1 = vector.load %arg3[%c0_1, %c0_2] : memref<32x32xbf16, #tpu.memory_space<vmem>>, vector<32x32xbf16>
    %cst = arith.constant dense<0.000000e+00> : vector<16x32xf32>
    %2 = tpu.matmul %0, %1, %cst {dimension_numbers = #tpu.dot_dimension_numbers<[1], [0], [0], [1], [0, 0, 1, 1], [], []>} : vector<16x32xbf16>, vector<32x32xbf16>, vector<16x32xf32> -> vector<16x32xf32>
    %3 = vector.shape_cast %2 : vector<16x32xf32> to vector<2x8x32xf32>
    %c0_3 = arith.constant 0 : index
    %c0_4 = arith.constant 0 : index
    %4 = vector.load %arg1[%c0_3, %c0_4] : memref<2x32xf32, #tpu.memory_space<vmem>>, vector<2x32xf32>
    %5 = vector.shape_cast %4 : vector<2x32xf32> to vector<2x1x32xf32>
    %6 = vector.broadcast %5 : vector<2x1x32xf32> to vector<2x8x32xf32>
    %7 = arith.addf %3, %6 : vector<2x8x32xf32>
    %8 = math.tanh %7 : vector<2x8x32xf32>
    %c0_5 = arith.constant 0 : index
    %c0_6 = arith.constant 0 : index
    %9 = vector.load %arg4[%c0_5, %c0_6] : memref<1x32xf32, #tpu.memory_space<vmem>>, vector<1x32xf32>
    %10 = vector.shape_cast %9 : vector<1x32xf32> to vector<1x1x32xf32>
    %11 = vector.broadcast %10 : vector<1x1x32xf32> to vector<2x8x32xf32>
    %12 = arith.mulf %8, %11 : vector<2x8x32xf32>
    %cst_7 = arith.constant dense<0.000000e+00> : vector<2x8xf32>
    %13 = vector.multi_reduction <add>, %12, %cst_7 [2] : vector<2x8x32xf32> to vector<2x8xf32>
    %cst_8 = arith.constant dense<0xFF800000> : vector<2xf32>
    %14 = vector.multi_reduction <maximumf>, %13, %cst_8 [1] : vector<2x8xf32> to vector<2xf32>
    %15 = vector.shape_cast %14 : vector<2xf32> to vector<2x1xf32>
    %16 = vector.broadcast %15 : vector<2x1xf32> to vector<2x8xf32>
    %17 = arith.subf %13, %16 : vector<2x8xf32>
    %18 = math.exp %17 : vector<2x8xf32>
    %cst_9 = arith.constant dense<0.000000e+00> : vector<2xf32>
    %19 = vector.multi_reduction <add>, %18, %cst_9 [1] : vector<2x8xf32> to vector<2xf32>
    %20 = vector.shape_cast %19 : vector<2xf32> to vector<2x1xf32>
    %21 = tpu.reciprocal %20 {approx = true} : vector<2x1xf32> -> vector<2x1xf32>
    %22 = vector.broadcast %21 : vector<2x1xf32> to vector<2x8xf32>
    %23 = arith.mulf %18, %22 : vector<2x8xf32>
    %c0_10 = arith.constant 0 : index
    %c0_11 = arith.constant 0 : index
    %24 = vector.load %arg5[%c0_10, %c0_11] : memref<2x8xf32, #tpu.memory_space<vmem>>, vector<2x8xf32>
    tpu.vector_store %arg5[%c0_10, %c0_11], %23 {strides = array<i32>} : memref<2x8xf32, #tpu.memory_space<vmem>>, vector<2x8xf32>,
    return
  }
  func.func @transform_0(%arg0: i32) -> (i32, i32) {
    %c0_i32 = arith.constant 0 : i32
    %c0_i32_0 = arith.constant 0 : i32
    return %arg0, %c0_i32 : i32, i32
  }
  func.func @transform_1(%arg0: i32) -> (i32, i32) {
    %c0_i32 = arith.constant 0 : i32
    %c0_i32_0 = arith.constant 0 : i32
    return %arg0, %c0_i32 : i32, i32
  }
  func.func @transform_2(%arg0: i32) -> (i32, i32) {
    %c0_i32 = arith.constant 0 : i32
    %c0_i32_0 = arith.constant 0 : i32
    %c0_i32_1 = arith.constant 0 : i32
    return %c0_i32, %c0_i32_0 : i32, i32
  }
  func.func @transform_3(%arg0: i32) -> (i32, i32) {
    %c0_i32 = arith.constant 0 : i32
    %c0_i32_0 = arith.constant 0 : i32
    %c0_i32_1 = arith.constant 0 : i32
    return %c0_i32, %c0_i32_0 : i32, i32
  }
  func.func @transform_4(%arg0: i32) -> (i32, i32) {
    %c0_i32 = arith.constant 0 : i32
    %c0_i32_0 = arith.constant 0 : i32
    return %arg0, %c0_i32 : i32, i32
  }
}

</mosaic_0001>

<llo_original>
// kernel: tpu_custom_call.1
$region0: #{tpu_custom_call.1}
  #allocation0 [shape = 'u32[]', space=smem, size = 0x4, offset = 0x4, fixed_abs, tag = 'smem constant byte address 0x4 - core index']
  #allocation1 [shape = 'u32[72,128]{1,0:T(1,128)}', space=vmem, size = 0x9000, scoped, tag = 'internal scratch']
  %s0 = inlined_call_operand.hbm [shape: f32[2,32], index: 0, kind: input, shape index: {}]
  %s1 = inlined_call_operand.hbm [shape: bf16[16,32], index: 1, kind: input, shape index: {}]
  %s2 = inlined_call_operand.hbm [shape: bf16[32,32], index: 2, kind: input, shape index: {}]
  %s3 = inlined_call_operand.vmem [shape: f32[1,32], index: 3, kind: input, shape index: {}]
  %s4 = inlined_call_operand.hbm [shape: f32[2,8], index: 4, kind: output, shape index: {}]
  %s5 = sld [smem:[#allocation0]]
  $region38: #{tpu_custom_call.1} parent=0
    _
  %s7 = ssub.s32 1, %s5
  %s8 = scalar_select 0, %s7, %s5
  $region1: #{tpu_custom_call.1} parent=0
    #allocation2 [shape = 'u8[1024]{0}', space=vmem, size = 0x400, scoped, tag = 'input window, operand 0, single buffered']
    #allocation3 [shape = 's32[1]{0}', space=sflag, size = 0x4, scoped, tag = 'scoped memory for tpu_custom_call.1']
    #allocation4 [shape = 's32[1]{0}', space=sflag, size = 0x4, scoped, tag = 'scoped memory for tpu_custom_call.1']
    #allocation5 [shape = 'u8[4096]{0}', space=vmem, size = 0x1000, scoped, tag = 'input window, operand 1, single buffered']
    #allocation6 [shape = 's32[1]{0}', space=sflag, size = 0x4, scoped, tag = 'scoped memory for tpu_custom_call.1']
    #allocation7 [shape = 'u8[8192]{0}', space=vmem, size = 0x2000, scoped, tag = 'input window, operand 2, single buffered']
    #allocation8 [shape = 'u8[1024]{0}', space=vmem, size = 0x400, scoped, tag = 'output window, operand 0, single buffered']
    %9 = vsyncpa [#allocation3], 0
    %10 = vsyncpa [#allocation6], 0
    %11 = vsyncpa [#allocation4], 0
    // Predicated region
    $region2: #{tpu_custom_call.1} parent=1 // pred_check
      _
    $region3: #{tpu_custom_call.1} parent=1 // pred_check_branch
      %13 = sbr.rel (0) target = $region5
    $region4: #{tpu_custom_call.1} parent=1 // pred_region
      %15 = vsyncadd [#allocation3], 0
      %s17 = sshll.u32 %s0, 4
      %s18 = int_to_ptr.hbm [resolvable:$true] %s17
      %s19 = sshll.u32 [#allocation2], 4
      %s20 = int_to_ptr.vmem [resolvable:$true] %s19
      %22 = dma.hbm_to_vmem [thread:$0]  %s18, 32, %s20, [#allocation3]
    $region5: #{tpu_custom_call.1} parent=1 // pred_fallthru
      _
    // Predicated region
    $region6: #{tpu_custom_call.1} parent=1 // pred_check
      _
    $region7: #{tpu_custom_call.1} parent=1 // pred_check_branch
      %24 = sbr.rel (0) target = $region9
    $region8: #{tpu_custom_call.1} parent=1 // pred_region
      %26 = vsyncadd [#allocation6], 0
      %s27 = sshll.u32 %s1, 4
      %s28 = int_to_ptr.hbm [resolvable:$true] %s27
      %s29 = sshll.u32 [#allocation5], 4
      %s30 = int_to_ptr.vmem [resolvable:$true] %s29
      %35 = dma.hbm_to_vmem [thread:$0]  %s28, 128, %s30, [#allocation6], 64, 64, 4
    $region9: #{tpu_custom_call.1} parent=1 // pred_fallthru
      _
    // Predicated region
    $region10: #{tpu_custom_call.1} parent=1 // pred_check
      _
    $region11: #{tpu_custom_call.1} parent=1 // pred_check_branch
      %37 = sbr.rel (0) target = $region13
    $region12: #{tpu_custom_call.1} parent=1 // pred_region
      %39 = vsyncadd [#allocation6], 0
      %s40 = sshll.u32 %s2, 4
      %s41 = int_to_ptr.hbm [resolvable:$true] %s40
      %s42 = sshll.u32 [#allocation7], 4
      %s43 = int_to_ptr.vmem [resolvable:$true] %s42
      %48 = dma.hbm_to_vmem [thread:$0]  %s41, 256, %s43, [#allocation6], 64, 64, 4
    $region13: #{tpu_custom_call.1} parent=1 // pred_fallthru
      _
    // Predicated region
    $region14: #{tpu_custom_call.1} parent=1 // pred_check
      _
    $region15: #{tpu_custom_call.1} parent=1 // pred_check_branch
      %50 = sbr.rel (0) target = $region17
    $region16: #{tpu_custom_call.1} parent=1 // pred_region
      _
    $region17: #{tpu_custom_call.1} parent=1 // pred_fallthru
      _
    // Predicated region
    $region18: #{tpu_custom_call.1} parent=1 // pred_check
      _
    $region19: #{tpu_custom_call.1} parent=1 // pred_check_branch
      %52 = sbr.rel (0) target = $region21
    $region20: #{tpu_custom_call.1} parent=1 // pred_region
      %54 = dma.done [#allocation3], 32
    $region21: #{tpu_custom_call.1} parent=1 // pred_fallthru
      _
    // Predicated region
    $region22: #{tpu_custom_call.1} parent=1 // pred_check
      _
    $region23: #{tpu_custom_call.1} parent=1 // pred_check_branch
      %56 = sbr.rel (0) target = $region25
    $region24: #{tpu_custom_call.1} parent=1 // pred_region
      %58 = dma.done [#allocation6], 128
    $region25: #{tpu_custom_call.1} parent=1 // pred_fallthru
      _
    // Predicated region
    $region26: #{tpu_custom_call.1} parent=1 // pred_check
      _
    $region27: #{tpu_custom_call.1} parent=1 // pred_check_branch
      %60 = sbr.rel (0) target = $region29
    $region28: #{tpu_custom_call.1} parent=1 // pred_region
      %62 = dma.done [#allocation6], 256
    $region29: #{tpu_custom_call.1} parent=1 // pred_fallthru
      _
    %v64 = vld [vmem:[#allocation5] sm:$0xf]
    %v65 = vld [vmem:[#allocation5 + $0x4] sm:$0xf]
    %v66 = vld [vmem:[#allocation7] sm:$0xf]
    %v67 = vld [vmem:[#allocation7 + $0x4] sm:$0xf]
    %v68 = vld [vmem:[#allocation7 + $0x8] sm:$0xf]
    %v69 = vld [vmem:[#allocation7 + $0xc] sm:$0xf]
    %v72 = vunpack.c.l.b16 %v64
    %v73 = vunpack.c.l.b16 %v65
    %v74 = vpack.c.b16 %v73, %v72
    %v79 = vunpack.c.l.b16 %v66
    %v80 = vunpack.c.l.b16 %v67
    %v81 = vunpack.c.l.b16 %v68
    %v82 = vunpack.c.l.b16 %v69
    %v83 = vpack.c.b16 %v80, %v79
    %v84 = vpack.c.b16 %v82, %v81
    %vm87 = vcmask 261120
    %v89 = vsel %vm87, %v74, 0
    %91 = vmatpush.bf16.msra.mxu0 0
    %92 = vmatpush.bf16.msra.mxu0 0
    %93 = vmatpush.bf16.msra.mxu0 0
    %94 = vmatpush.bf16.msra.mxu0 0
    %95 = vmatpush.bf16.msra.mxu0 0
    %96 = vmatpush.bf16.msra.mxu0 0
    %97 = vmatpush.bf16.msra.mxu0 %v84
    %98 = vmatpush.bf16.msra.mxu0 %v83
    %99 = vmatmul.bf16.gmra.mxu0 %v89
    %v100 = vpop.f32.mrf.mxu0
    %v101 = vadd.f32 0.0, %v100
    %v102 = vpop.f32.mrf.mxu0
    %v103 = vadd.f32 0.0, %v102
    %104 = vdwg.mxu0
    %v105 = vld [vmem:[#allocation2] sm:$0x3]
    %v107 = vrot.slane %v105, 1
    %v108 = vperm.slane %v105, 0
    %v109 = vperm.slane %v107, 0
    %v112 = vadd.f32 %v101, %v108
    %v113 = vadd.f32 %v103, %v109
    %v114 = vtanh.pop %v112
    %v115 = vtanh.pop %v113
    %v116 = vld [vmem:[%s3] sm:$0x1]
    %v118 = vperm.slane %v116, 0
    %v120 = vmul.f32 %v114, %v118
    %v121 = vmul.f32 %v115, %v118
    %v122 = vsel %vm87, %v120, 0.0
    %123 = vadd.xlane.f32.xlu0 %v122
    %v124 = vpop.xlane.xlu0 %123
    %v125 = vsel %vm87, %v121, 0.0
    %126 = vadd.xlane.f32.xlu0 %v125
    %v127 = vpop.xlane.xlu0 %126
    %v130 = vlaneseq
    %v131 = vand.u32 %v130, 127
    %v132 = vperm.slane %v124, %v131
    %v133 = vperm.slane %v127, %v131
    %vm134 = vcmask 1041409
    %v135 = vsel %vm134, %v133, %v132
    %vm137 = vcmask 58368
    %v138 = vsel %vm137, %v135, -inf
    %139 = vmax.xlane.f32.xlu0 %v138
    %v140 = vpop.xlane.xlu0 %139
    %v142 = vperm.slane %v140, 0
    %v143 = vperm.slane %v140, 1
    %v146 = vsub.f32 %v124, %v142
    %v147 = vsub.f32 %v127, %v143
    %v148 = vmul.f32 %v146, 1.442695
    %v149 = vpow.pop %v148
    %v150 = vmul.f32 %v147, 1.442695
    %v151 = vpow.pop %v150
    %154 = vset.pattern.permute.xlu0 0
    %155 = vperm.xlu0 %154, %v149
    %v156 = vpop.permute.xlu0 %155
    %157 = vset.pattern.permute.xlu0 0
    %158 = vperm.xlu0 %157, %v151
    %v159 = vpop.permute.xlu0 %158
    %v160 = vperm.slane %v156, %v131
    %v161 = vperm.slane %v159, %v131
    %v162 = vsel %vm134, %v161, %v160
    %v164 = vsel %vm137, %v162, 0.0
    %165 = vadd.xlane.f32.xlu0 %v164
    %v166 = vpop.xlane.xlu0 %165
    %v167 = vrcp.pop %v166
    %v169 = vperm.slane %v167, 0
    %v170 = vperm.slane %v167, 1
    %v173 = vmul.f32 %v149, %v169
    %v174 = vmul.f32 %v151, %v170
    %177 = vset.pattern.permute.xlu0 0
    %178 = vperm.xlu0 %177, %v173
    %v179 = vpop.permute.xlu0 %178
    %180 = vset.pattern.permute.xlu0 0
    %181 = vperm.xlu0 %180, %v174
    %v182 = vpop.permute.xlu0 %181
    %v183 = vperm.slane %v179, %v131
    %v184 = vperm.slane %v182, %v131
    %v185 = vsel %vm134, %v184, %v183
    %187 = vst.msk [vmem:[#allocation8] sm:$0x3] %vm137, %v185
    // Predicated region
    $region30: #{tpu_custom_call.1} parent=1 // pred_check
      _
    $region31: #{tpu_custom_call.1} parent=1 // pred_check_branch
      %189 = sbr.rel (0) target = $region33
    $region32: #{tpu_custom_call.1} parent=1 // pred_region
      %191 = vsyncadd [#allocation4], 0
      %s193 = sshll.u32 [#allocation8], 4
      %s194 = int_to_ptr.vmem [resolvable:$true] %s193
      %s195 = sshll.u32 %s4, 4
      %s196 = int_to_ptr.hbm [resolvable:$true] %s195
      %198 = dma.vmem_to_hbm [thread:$0]  %s194, 32, %s196, [#allocation4]
    $region33: #{tpu_custom_call.1} parent=1 // pred_fallthru
      _
    // Predicated region
    $region34: #{tpu_custom_call.1} parent=1 // pred_check
      _
    $region35: #{tpu_custom_call.1} parent=1 // pred_check_branch
      %200 = sbr.rel (0) target = $region37
    $region36: #{tpu_custom_call.1} parent=1 // pred_region
      %202 = dma.done [#allocation4], 32
    $region37: #{tpu_custom_call.1} parent=1 // pred_fallthru
      _
    %203 = vsyncpa [#allocation3], 1
    %204 = vsyncpa [#allocation6], 1
    %205 = vsyncpa [#allocation4], 1

</llo_original>
